<compile_context>
chip_gen: v6e
topology: v6e:2x2x1
jax: 0.10.0
libtpu: 0.0.40
codegen_flags: <defaults>
</compile_context>

<pallas_src>
import functools

import jax
import jax.numpy as jnp
from jax.experimental import pallas as pl
from jax.experimental.pallas import tpu as pltpu

# ---- hyperparameters (mirrors the PyTorch __init__ defaults) ----------------
FOCAL_WEIGHT = 0.5
SMOOTH_WEIGHT = 0.5
GAMMA = 2.0          # FocalLoss(gamma=2)
ALPHA = 0.25         # FocalLoss(alpha=0.25)
SMOOTHING = 0.1      # LabelSmoothingLoss(smoothing=0.1)

_LANE = 128


def _round_up(x, m):
    return ((x + m - 1) // m) * m


def _combo_loss_kernel(logits_ref, targets_ref, out_ref, *,
                       n_true, c_true, tile_n, ragged):
    logits = logits_ref[...].astype(jnp.float32)          # (tile_n, C)
    tgt = targets_ref[...]                                # (tile_n, 1) int32
    tn, c = logits.shape

    # numerically-stable log-softmax pieces over the class (lane) axis
    m = jnp.max(logits, axis=-1, keepdims=True)           # (tile_n, 1)
    shifted = logits - m
    sumexp = jnp.sum(jnp.exp(shifted), axis=-1, keepdims=True)
    log_sumexp = jnp.log(sumexp)

    # shifted[target] via a masked sum — no f32 one_hot materialized
    col = jax.lax.broadcasted_iota(jnp.int32, (tn, c), dimension=1)
    shifted_tgt = jnp.sum(jnp.where(col == tgt, shifted, 0.0),
                          axis=-1, keepdims=True)

    # cross entropy per row: logsumexp - shifted[target]
    ce = log_sumexp - shifted_tgt                          # (tile_n, 1)

    # focal modulation: pt = softmax[target] = exp(-ce); column-width EUP exp
    pt = jnp.exp(shifted_tgt - log_sumexp)
    one_m_pt = 1.0 - pt
    if GAMMA == 2.0:
        focal_mod = one_m_pt * one_m_pt                    # exact square, no pow
    else:
        focal_mod = jnp.power(jnp.maximum(one_m_pt, 0.0), GAMMA)

    # sum_c log_softmax = sum_c shifted - C * logsumexp  (class dim is exact,
    # no padded lanes to exclude)
    sum_log_softmax = (jnp.sum(shifted, axis=-1, keepdims=True)
                       - float(c_true) * log_sumexp)

    # weighted combo with the scalar weights folded algebraically:
    #   FW*alpha*focal_mod*ce + SW*(conf*ce - sv*sum_log_softmax)
    confidence = 1.0 - SMOOTHING
    smooth_value = SMOOTHING / c_true
    per_row = (ce * (FOCAL_WEIGHT * ALPHA * focal_mod
                     + SMOOTH_WEIGHT * confidence)
               - (SMOOTH_WEIGHT * smooth_value) * sum_log_softmax)

    # mask rows beyond the true batch size (only if the last tile is ragged)
    if ragged:
        row = jax.lax.broadcasted_iota(jnp.int32, (tn, 1), dimension=0)
        global_row = pl.program_id(0) * tile_n + row
        per_row = jnp.where(global_row < n_true, per_row, 0.0)

    partial = jnp.sum(per_row)                             # weighted partial sum
    out_ref[...] = jnp.broadcast_to(
        partial.reshape(1, 1, 1), (1, 8, _LANE)).astype(jnp.float32)


def focal_label_smoothing_combo_loss(logits, targets):
    """logits: (N, C) float; targets: (N,) int. Returns scalar float32."""
    n, c = logits.shape
    itemsize = jnp.dtype(logits.dtype).itemsize
    # sublane packing: f32/i32 -> 8 rows, bf16 -> 16, int8/fp8 -> 32
    pack = max(8, 32 // itemsize)

    # ~4 MiB per (double-buffered) logits tile: amortizes the ~0.35us per-step
    # overhead while staying inside the 32 MiB vmem_limit below on all chips.
    budget = 4 * 1024 * 1024
    bytes_per_row = max(1, c * itemsize)
    tile_n = max(pack, (budget // bytes_per_row) // pack * pack)
    tile_n = min(tile_n, _round_up(n, pack))
    # Keep >= 2 grid steps when the batch allows it, so v7x's two TensorCores
    # both get work from the "parallel" grid axis.
    if n > pack:
        tile_n = min(tile_n, _round_up(-(-n // 2), pack))

    num_tiles = pl.cdiv(n, tile_n)
    ragged = (n % tile_n) != 0

    targets_2d = targets.astype(jnp.int32).reshape(n, 1)

    kernel = functools.partial(_combo_loss_kernel, n_true=n, c_true=c,
                               tile_n=tile_n, ragged=ragged)

    cost = pl.CostEstimate(
        flops=12 * n * c,
        transcendentals=n * c + 2 * n,
        bytes_accessed=n * c * itemsize + n * 4 + num_tiles * 8 * _LANE * 4)

    partials = pl.pallas_call(
        kernel,
        out_shape=jax.ShapeDtypeStruct((num_tiles, 8, _LANE), jnp.float32),
        grid=(num_tiles,),
        in_specs=[
            # class dim = full array extent (no 128 padding needed)
            pl.BlockSpec((tile_n, c), lambda i: (i, 0)),
            pl.BlockSpec((tile_n, 1), lambda i: (i, 0)),
        ],
        out_specs=pl.BlockSpec((1, 8, _LANE), lambda i: (i, 0, 0)),
        compiler_params=pltpu.CompilerParams(
            dimension_semantics=("parallel",),
            vmem_limit_bytes=32 * 1024 * 1024),
        cost_estimate=cost,
    )(logits, targets_2d)

    # tiny host-side reduction over per-tile partials, single divide by true N
    return jnp.sum(partials[:, 0, 0]) / n


def _reference(logits, targets):
    """Pure-JAX reference reproducing the PyTorch forward exactly."""
    n, c = logits.shape
    log_sm = jax.nn.log_softmax(logits.astype(jnp.float32), axis=-1)
    one_hot = jax.nn.one_hot(targets, c, dtype=jnp.float32)
    ce = -jnp.sum(one_hot * log_sm, axis=-1)
    pt = jnp.exp(-ce)
    focal = jnp.mean(ALPHA * (1.0 - pt) ** GAMMA * ce)
    smoothed = one_hot * (1.0 - SMOOTHING) + SMOOTHING / c
    smooth = jnp.mean(jnp.sum(-smoothed * log_sm, axis=-1))
    return FOCAL_WEIGHT * focal + SMOOTH_WEIGHT * smooth


if __name__ == "__main__":
    key = jax.random.PRNGKey(0)
    k_logits, k_tgt = jax.random.split(key)
    N, C = 8, 32                                   # small batch, 32 classes
    logits = jax.random.normal(k_logits, (N, C), dtype=jnp.float32)
    targets = jax.random.randint(k_tgt, (N,), 0, C, dtype=jnp.int32)

    loss = focal_label_smoothing_combo_loss(logits, targets)
    jax.block_until_ready(loss)

    ref = _reference(logits, targets)
    assert jnp.allclose(loss, ref, atol=1e-5, rtol=1e-5), (loss, ref)
    print("KERNEL_OK")
</pallas_src>

<mosaic_0001>
module attributes {stable_mosaic.version = 11 : i64} {
  func.func @_combo_loss_kernel(%arg0: i32, %arg1: memref<8x32xf32, #tpu.memory_space<vmem>>, %arg2: memref<8x1xi32, #tpu.memory_space<vmem>>, %arg3: memref<1x8x128xf32, #tpu.memory_space<vmem>>) attributes {dimension_semantics = [#tpu.dimension_semantics<parallel>], iteration_bounds = array<i64: 1>, scalar_prefetch = 0 : i64, scratch_operands = 0 : i64, tpu.core_type = #tpu.core_type<tc>, window_params = [{transform_indices = @transform_0, window_bounds = array<i64: 8, 32>}, {transform_indices = @transform_1, window_bounds = array<i64: 8, 1>}, {transform_indices = @transform_2, window_bounds = array<i64: 1, 8, 128>}]} {
    %c0 = arith.constant 0 : index
    %c0_0 = arith.constant 0 : index
    %0 = vector.load %arg1[%c0, %c0_0] : memref<8x32xf32, #tpu.memory_space<vmem>>, vector<8x32xf32>
    %c0_1 = arith.constant 0 : index
    %c0_2 = arith.constant 0 : index
    %1 = vector.load %arg2[%c0_1, %c0_2] : memref<8x1xi32, #tpu.memory_space<vmem>>, vector<8x1xi32>
    %cst = arith.constant dense<0xFF800000> : vector<8xf32>
    %2 = vector.multi_reduction <maximumf>, %0, %cst [1] : vector<8x32xf32> to vector<8xf32>
    %3 = vector.shape_cast %2 : vector<8xf32> to vector<8x1xf32>
    %4 = vector.broadcast %3 : vector<8x1xf32> to vector<8x32xf32>
    %5 = arith.subf %0, %4 : vector<8x32xf32>
    %6 = math.exp %5 : vector<8x32xf32>
    %cst_3 = arith.constant dense<0.000000e+00> : vector<8xf32>
    %7 = vector.multi_reduction <add>, %6, %cst_3 [1] : vector<8x32xf32> to vector<8xf32>
    %8 = vector.shape_cast %7 : vector<8xf32> to vector<8x1xf32>
    %9 = math.log %8 : vector<8x1xf32>
    %10 = tpu.iota {dimensions = array<i32: 1>} : vector<8x32xi32>
    %11 = vector.broadcast %1 : vector<8x1xi32> to vector<8x32xi32>
    %12 = arith.cmpi eq, %10, %11 : vector<8x32xi32>
    %cst_4 = arith.constant 0.000000e+00 : f32
    %13 = vector.broadcast %cst_4 : f32 to vector<8x32xf32>
    %14 = arith.select %12, %5, %13 : vector<8x32xi1>, vector<8x32xf32>
    %cst_5 = arith.constant dense<0.000000e+00> : vector<8xf32>
    %15 = vector.multi_reduction <add>, %14, %cst_5 [1] : vector<8x32xf32> to vector<8xf32>
    %16 = vector.shape_cast %15 : vector<8xf32> to vector<8x1xf32>
    %17 = arith.subf %9, %16 : vector<8x1xf32>
    %18 = arith.subf %16, %9 : vector<8x1xf32>
    %19 = math.exp %18 : vector<8x1xf32>
    %cst_6 = arith.constant 1.000000e+00 : f32
    %20 = vector.broadcast %cst_6 : f32 to vector<8x1xf32>
    %21 = arith.subf %20, %19 : vector<8x1xf32>
    %22 = arith.mulf %21, %21 : vector<8x1xf32>
    %cst_7 = arith.constant dense<0.000000e+00> : vector<8xf32>
    %23 = vector.multi_reduction <add>, %5, %cst_7 [1] : vector<8x32xf32> to vector<8xf32>
    %24 = vector.shape_cast %23 : vector<8xf32> to vector<8x1xf32>
    %cst_8 = arith.constant 3.200000e+01 : f32
    %25 = vector.broadcast %cst_8 : f32 to vector<8x1xf32>
    %26 = arith.mulf %25, %9 : vector<8x1xf32>
    %27 = arith.subf %24, %26 : vector<8x1xf32>
    %cst_9 = arith.constant 1.250000e-01 : f32
    %28 = vector.broadcast %cst_9 : f32 to vector<8x1xf32>
    %29 = arith.mulf %28, %22 : vector<8x1xf32>
    %cst_10 = arith.constant 4.500000e-01 : f32
    %30 = vector.broadcast %cst_10 : f32 to vector<8x1xf32>
    %31 = arith.addf %29, %30 : vector<8x1xf32>
    %32 = arith.mulf %17, %31 : vector<8x1xf32>
    %cst_11 = arith.constant 1.562500e-03 : f32
    %33 = vector.broadcast %cst_11 : f32 to vector<8x1xf32>
    %34 = arith.mulf %33, %27 : vector<8x1xf32>
    %35 = arith.subf %32, %34 : vector<8x1xf32>
    %36 = vector.shape_cast %35 : vector<8x1xf32> to vector<1x8x1xf32>
    %cst_12 = arith.constant dense<0.000000e+00> : vector<1xf32>
    %37 = vector.multi_reduction <add>, %36, %cst_12 [1, 2] : vector<1x8x1xf32> to vector<1xf32>
    %38 = vector.shape_cast %37 : vector<1xf32> to vector<1x1x1xf32>
    %39 = vector.extract %38[0, 0, 0] : f32 from vector<1x1x1xf32>
    %40 = vector.broadcast %39 : f32 to vector<1x1x1xf32>
    %41 = vector.shape_cast %40 : vector<1x1x1xf32> to vector<1x1x1xf32>
    %42 = vector.broadcast %41 : vector<1x1x1xf32> to vector<1x8x128xf32>
    %c0_13 = arith.constant 0 : index
    %c0_14 = arith.constant 0 : index
    %c0_15 = arith.constant 0 : index
    %43 = vector.load %arg3[%c0_13, %c0_14, %c0_15] : memref<1x8x128xf32, #tpu.memory_space<vmem>>, vector<1x8x128xf32>
    tpu.vector_store %arg3[%c0_13, %c0_14, %c0_15], %42 {strides = array<i32>} : memref<1x8x128xf32, #tpu.memory_space<vmem>>, vector<1x8x128xf32>,
    return
  }
  func.func @transform_0(%arg0: i32) -> (i32, i32) {
    %c0_i32 = arith.constant 0 : i32
    %c0_i32_0 = arith.constant 0 : i32
    return %arg0, %c0_i32 : i32, i32
  }
  func.func @transform_1(%arg0: i32) -> (i32, i32) {
    %c0_i32 = arith.constant 0 : i32
    %c0_i32_0 = arith.constant 0 : i32
    return %arg0, %c0_i32 : i32, i32
  }
  func.func @transform_2(%arg0: i32) -> (i32, i32, i32) {
    %c0_i32 = arith.constant 0 : i32
    %c0_i32_0 = arith.constant 0 : i32
    %c0_i32_1 = arith.constant 0 : i32
    return %arg0, %c0_i32, %c0_i32_0 : i32, i32, i32
  }
}

</mosaic_0001>

<llo_original>
// kernel: tpu_custom_call.1
$region0: #{tpu_custom_call.1}
  #allocation0 [shape = 'u32[]', space=smem, size = 0x4, offset = 0x4, fixed_abs, tag = 'smem constant byte address 0x4 - core index']
  #allocation1 [shape = 'u32[144,128]{1,0:T(1,128)}', space=vmem, size = 0x12000, scoped, tag = 'internal scratch']
  %s0 = inlined_call_operand.vmem [shape: f32[8,32], index: 0, kind: input, shape index: {}]
  %s1 = inlined_call_operand.vmem [shape: s32[8,1], index: 1, kind: input, shape index: {}]
  %s2 = inlined_call_operand.hbm [shape: f32[1,8,128], index: 2, kind: output, shape index: {}]
  %s3 = sld [smem:[#allocation0]]
  $region18: #{tpu_custom_call.1} parent=0
    _
  %s5 = ssub.s32 1, %s3
  %s6 = scalar_select 0, %s5, %s3
  $region1: #{tpu_custom_call.1} parent=0
    #allocation2 [shape = 'u8[4096]{0}', space=vmem, size = 0x1000, scoped, tag = 'output window, operand 0, single buffered']
    #allocation3 [shape = 's32[1]{0}', space=sflag, size = 0x4, scoped, tag = 'scoped memory for tpu_custom_call.1']
    %7 = vsyncpa [#allocation3], 0
    // Predicated region
    $region2: #{tpu_custom_call.1} parent=1 // pred_check
      _
    $region3: #{tpu_custom_call.1} parent=1 // pred_check_branch
      %9 = sbr.rel (0) target = $region5
    $region4: #{tpu_custom_call.1} parent=1 // pred_region
      _
    $region5: #{tpu_custom_call.1} parent=1 // pred_fallthru
      _
    // Predicated region
    $region6: #{tpu_custom_call.1} parent=1 // pred_check
      _
    $region7: #{tpu_custom_call.1} parent=1 // pred_check_branch
      %11 = sbr.rel (0) target = $region9
    $region8: #{tpu_custom_call.1} parent=1 // pred_region
      _
    $region9: #{tpu_custom_call.1} parent=1 // pred_fallthru
      _
    %v12 = vld [vmem:[%s0] sm:$0xff]
    %v13 = vld [vmem:[%s1] sm:$0xff]
    %vm14 = vcmask 261120
    %v15 = vsel %vm14, %v12, -inf
    %16 = vmax.xlane.f32.xlu0 %v15
    %v17 = vpop.xlane.xlu0 %16
    %v18 = vsub.f32 %v12, %v17
    %v19 = vmul.f32 %v18, 1.442695
    %v20 = vpow.pop %v19
    %v21 = vsel %vm14, %v20, 0.0
    %22 = vadd.xlane.f32.xlu0 %v21
    %v23 = vpop.xlane.xlu0 %22
    %v24 = vlog2.pop %v23
    %v25 = vmul.f32 %v24, 0.6931472
    %v26 = vlaneseq
    %v27 = vand.u32 %v26, 127
    %28 = vset.pattern.permute.xlu0 0
    %29 = vperm.xlu0 %28, %v13
    %v30 = vpop.permute.xlu0 %29
    %vm31 = vcmp.eq.s32.totalorder %v27, %v30
    %v32 = vsel %vm31, %v18, 0.0
    %v33 = vsel %vm14, %v32, 0.0
    %34 = vadd.xlane.f32.xlu0 %v33
    %v35 = vpop.xlane.xlu0 %34
    %v36 = vsub.f32 %v25, %v35
    %v37 = vsub.f32 %v35, %v25
    %v38 = vmul.f32 %v37, 1.442695
    %v39 = vpow.pop %v38
    %v40 = vsub.f32 1.0, %v39
    %v41 = vmul.f32 %v40, %v40
    %v42 = vsel %vm14, %v18, 0.0
    %43 = vadd.xlane.f32.xlu0 %v42
    %v44 = vpop.xlane.xlu0 %43
    %v45 = vmul.f32 %v25, 32.0
    %v46 = vsub.f32 %v44, %v45
    %v47 = vmul.f32 %v41, 0.125
    %v48 = vadd.f32 %v47, 0.45
    %v49 = vmul.f32 %v36, %v48
    %v50 = vmul.f32 %v46, 0.0015625
    %v51 = vsub.f32 %v49, %v50
    %vm52 = vcmask 7168
    %v53 = vsel %vm52, %v51, 0.0
    %54 = vadd.xlane.f32.xlu0 %v53
    %v55 = vpop.xlane.xlu0 %54
    %v56 = vrot.slane %v55, 4
    %v57 = vadd.f32 %v55, %v56
    %v58 = vrot.slane %v57, 2
    %v59 = vadd.f32 %v57, %v58
    %v60 = vrot.slane %v59, 1
    %v61 = vadd.f32 %v59, %v60
    %s62 = vtos %v61
    %v63 = vstv %s62
    %64 = vst [vmem:[#allocation2] sm:$0xff] %v63
    // Predicated region
    $region10: #{tpu_custom_call.1} parent=1 // pred_check
      _
    $region11: #{tpu_custom_call.1} parent=1 // pred_check_branch
      %66 = sbr.rel (0) target = $region13
    $region12: #{tpu_custom_call.1} parent=1 // pred_region
      %s68 = ssub.s32 128, 128
      %69 = vsyncadd [#allocation3], %s68
      %s71 = sshll.u32 [#allocation2], 4
      %s72 = int_to_ptr.vmem [resolvable:$true] %s71
      %74 = dma.vmem_to_hbm [thread:$0]  %s72, 128, %s2, [#allocation3]
    $region13: #{tpu_custom_call.1} parent=1 // pred_fallthru
      _
    // Predicated region
    $region14: #{tpu_custom_call.1} parent=1 // pred_check
      _
    $region15: #{tpu_custom_call.1} parent=1 // pred_check_branch
      %76 = sbr.rel (0) target = $region17
    $region16: #{tpu_custom_call.1} parent=1 // pred_region
      %77 = dma.done [#allocation3], 128
    $region17: #{tpu_custom_call.1} parent=1 // pred_fallthru
      _
    %78 = vsyncpa [#allocation3], 1

</llo_original>
